<compile_context>
chip_gen: v5e
topology: v5e:2x2
jax: 0.10.0
libtpu: 0.0.40
codegen_flags: <defaults>
</compile_context>

<pallas_src>
import functools

import jax
import jax.numpy as jnp
from jax import lax
from jax.experimental import pallas as pl
from jax.experimental.pallas import tpu as pltpu


def _round_up(x, m):
    return (x + m - 1) // m * m


def _arefiner_small_kernel(x_ref, w_ref, b_ref, o_ref, *, inv_hw):
    """Whole problem in one block: pool + Linear + bias + ReLU (batched)."""
    pooled = jnp.sum(x_ref[...].astype(jnp.float32), axis=-1) * inv_hw      # (N, C)
    y = jnp.dot(pooled, w_ref[...], preferred_element_type=jnp.float32)     # (N, OUT_P)
    o_ref[...] = jnp.maximum(y + b_ref[...], 0.0)


def _arefiner_tiled_kernel(x_ref, w_ref, b_ref, o_ref, acc_ref, *,
                           hw, t_hw, ragged):
    """Grid (N, hw_tiles), reduction axis innermost.

      x_ref  : (1, C, T_HW)  natural-layout spatial tile (H*W on lanes), native dtype
      w_ref  : (C, OUT_P)    Linear weight (transposed, lane-padded), resident
      b_ref  : (1, OUT_P)    Linear bias (lane-padded), resident
      o_ref  : (1, 1, OUT_P) output row of this batch element
      acc_ref: (C, 128) f32  per-lane-group running spatial sum (VMEM scratch)
    """
    t = pl.program_id(1)
    C = x_ref.shape[1]
    n_groups = t_hw // 128

    @pl.when(t == 0)
    def _():
        acc_ref[...] = jnp.zeros_like(acc_ref)

    if ragged:
        # Hoisted out of the loop (JAX does not CSE broadcast_in_dim).
        lane_iota = lax.broadcasted_iota(jnp.int32, (C, 128), 1)
        tile_base = t * t_hw

    def body(g, part):
        off = pl.multiple_of(g * 128, 128)
        chunk = x_ref[0, :, pl.ds(off, 128)].astype(jnp.float32)            # (C, 128)
        if ragged:
            pos = tile_base + off + lane_iota
            chunk = jnp.where(pos < hw, chunk, 0.0)
        return part + chunk

    acc_ref[...] = lax.fori_loop(0, n_groups, body, acc_ref[...], unroll=8)

    @pl.when(t == pl.num_programs(1) - 1)
    def _():
        # One-off XLU cross-lane reduce + tiny MXU matmul + bias + ReLU.
        pooled = jnp.sum(acc_ref[...], axis=-1, keepdims=True) * (1.0 / hw)  # (C, 1)
        y = lax.dot_general(pooled, w_ref[...],
                            dimension_numbers=(((0,), (0,)), ((), ())),
                            preferred_element_type=jnp.float32)              # (1, OUT_P)
        o_ref[0] = jnp.maximum(y + b_ref[...], 0.0)


def arefiner_forward(x, w, b, *, target_tile_bytes=2 << 20, small_bytes=4 << 20):
    """ARefiner forward: relu(Linear(flatten(AdaptiveAvgPool2d(1)(x)))).

    x: (N, C, H, W) any float dtype; w: (3, C) nn.Linear weight; b: (3,) bias.
    Returns (N, 3) float32.
    """
    N, C, H, W = x.shape
    hw = H * W
    out_f = w.shape[0]
    out_p = _round_up(out_f, 128)

    # Free reshape only — native dtype streamed straight from HBM.
    xf = x.reshape(N, C, hw)

    # Pad the tiny Linear params once to a lane-dense 128-wide output.
    w_pad = jnp.zeros((C, out_p), jnp.float32).at[:, :out_f].set(
        w.T.astype(jnp.float32))
    b_pad = jnp.zeros((1, out_p), jnp.float32).at[0, :out_f].set(
        b.astype(jnp.float32))

    itemsize = jnp.dtype(xf.dtype).itemsize

    if xf.size * itemsize <= small_bytes:
        # Tiny problem: one grid step, one DMA, batched epilogue.
        out = pl.pallas_call(
            functools.partial(_arefiner_small_kernel, inv_hw=1.0 / hw),
            out_shape=jax.ShapeDtypeStruct((N, out_p), jnp.float32),
        )(xf, w_pad, b_pad)
        return out[:, :out_f]

    # Large activations: ~target_tile_bytes per (double-buffered) input buffer,
    # lane-aligned spatial tile; ragged last tile is masked in-kernel.
    t_hw = max(128, (target_tile_bytes // (C * itemsize)) // 128 * 128)
    t_hw = min(t_hw, _round_up(hw, 128))
    hw_tiles = pl.cdiv(hw, t_hw)
    ragged = (hw % t_hw) != 0

    kernel = functools.partial(_arefiner_tiled_kernel,
                               hw=hw, t_hw=t_hw, ragged=ragged)
    out = pl.pallas_call(
        kernel,
        out_shape=jax.ShapeDtypeStruct((N, 1, out_p), jnp.float32),
        grid_spec=pltpu.PrefetchScalarGridSpec(
            num_scalar_prefetch=0,
            grid=(N, hw_tiles),
            in_specs=[
                pl.BlockSpec((1, C, t_hw), lambda n, t: (n, 0, t)),
                pl.BlockSpec((C, out_p), lambda n, t: (0, 0)),
                pl.BlockSpec((1, out_p), lambda n, t: (0, 0)),
            ],
            out_specs=pl.BlockSpec((1, 1, out_p), lambda n, t: (n, 0, 0)),
            scratch_shapes=[pltpu.VMEM((C, 128), jnp.float32)],
        ),
        compiler_params=pltpu.CompilerParams(
            dimension_semantics=("parallel", "arbitrary")),
    )(xf, w_pad, b_pad)
    return out[:, 0, :out_f]


if __name__ == "__main__":
    # ARefiner(ngf=8, n_downsampling=2): in_features = ngf * 2**n_downsampling = 32.
    ngf, n_downsampling = 8, 2
    C = ngf * (2 ** n_downsampling)

    key = jax.random.PRNGKey(0)
    kx, kw, kb, kx2 = jax.random.split(key, 4)
    w = 0.1 * jax.random.normal(kw, (3, C), jnp.float32)   # nn.Linear weight (out, in)
    b = 0.1 * jax.random.normal(kb, (3,), jnp.float32)     # nn.Linear bias

    # --- Test 1: demo shape (tiny) -> single-step path, f32 activations. ---
    N, H, W = 2, 16, 16
    x = jax.random.normal(kx, (N, C, H, W), jnp.float32)
    fwd = jax.jit(arefiner_forward)
    out = jax.block_until_ready(fwd(x, w, b))
    ref = jax.nn.relu(jnp.mean(x, axis=(2, 3)) @ w.T + b)
    assert out.shape == (N, 3), out.shape
    assert bool(jnp.all(jnp.isfinite(out)))
    assert bool(jnp.allclose(out, ref, rtol=1e-5, atol=1e-5)), (
        float(jnp.max(jnp.abs(out - ref))))

    # --- Test 2: force the tiled path (bf16 activations, ragged last tile). ---
    N2, H2, W2 = 2, 40, 40
    x2 = jax.random.normal(kx2, (N2, C, H2, W2), jnp.float32).astype(jnp.bfloat16)
    fwd_tiled = jax.jit(functools.partial(
        arefiner_forward, small_bytes=0, target_tile_bytes=64 * 1024))
    out2 = jax.block_until_ready(fwd_tiled(x2, w, b))
    ref2 = jax.nn.relu(jnp.mean(x2.astype(jnp.float32), axis=(2, 3)) @ w.T + b)
    assert out2.shape == (N2, 3), out2.shape
    assert bool(jnp.all(jnp.isfinite(out2)))
    assert bool(jnp.allclose(out2, ref2, rtol=1e-3, atol=1e-3)), (
        float(jnp.max(jnp.abs(out2 - ref2))))

    print("KERNEL_OK")
</pallas_src>

<mosaic_0001>
module attributes {stable_mosaic.version = 11 : i64} {
  func.func @_arefiner_small_kernel(%arg0: memref<2x32x256xf32, #tpu.memory_space<vmem>>, %arg1: memref<32x128xf32, #tpu.memory_space<vmem>>, %arg2: memref<1x128xf32, #tpu.memory_space<vmem>>, %arg3: memref<2x128xf32, #tpu.memory_space<vmem>>) attributes {dimension_semantics = [], scalar_prefetch = 0 : i64, scratch_operands = 0 : i64, tpu.core_type = #tpu.core_type<tc>} {
    %c0 = arith.constant 0 : index
    %c0_0 = arith.constant 0 : index
    %c0_1 = arith.constant 0 : index
    %0 = vector.load %arg0[%c0, %c0_0, %c0_1] : memref<2x32x256xf32, #tpu.memory_space<vmem>>, vector<2x32x256xf32>
    %cst = arith.constant dense<0.000000e+00> : vector<2x32xf32>
    %1 = vector.multi_reduction <add>, %0, %cst [2] : vector<2x32x256xf32> to vector<2x32xf32>
    %cst_2 = arith.constant 3.906250e-03 : f32
    %2 = vector.broadcast %cst_2 : f32 to vector<2x32xf32>
    %3 = arith.mulf %1, %2 : vector<2x32xf32>
    %c0_3 = arith.constant 0 : index
    %c0_4 = arith.constant 0 : index
    %4 = vector.load %arg1[%c0_3, %c0_4] : memref<32x128xf32, #tpu.memory_space<vmem>>, vector<32x128xf32>
    %cst_5 = arith.constant dense<0.000000e+00> : vector<2x128xf32>
    %5 = tpu.matmul %3, %4, %cst_5 {dimension_numbers = #tpu.dot_dimension_numbers<[1], [0], [0], [1], [0, 0, 1, 1], [], []>} : vector<2x32xf32>, vector<32x128xf32>, vector<2x128xf32> -> vector<2x128xf32>
    %c0_6 = arith.constant 0 : index
    %c0_7 = arith.constant 0 : index
    %6 = vector.load %arg2[%c0_6, %c0_7] : memref<1x128xf32, #tpu.memory_space<vmem>>, vector<1x128xf32>
    %7 = vector.broadcast %6 : vector<1x128xf32> to vector<2x128xf32>
    %8 = arith.addf %5, %7 : vector<2x128xf32>
    %cst_8 = arith.constant 0.000000e+00 : f32
    %9 = vector.broadcast %cst_8 : f32 to vector<2x128xf32>
    %10 = arith.maximumf %8, %9 : vector<2x128xf32>
    %c0_9 = arith.constant 0 : index
    %c0_10 = arith.constant 0 : index
    %11 = vector.load %arg3[%c0_9, %c0_10] : memref<2x128xf32, #tpu.memory_space<vmem>>, vector<2x128xf32>
    tpu.vector_store %arg3[%c0_9, %c0_10], %10 {strides = array<i32>} : memref<2x128xf32, #tpu.memory_space<vmem>>, vector<2x128xf32>,
    return
  }
}

</mosaic_0001>

<llo_original>
// kernel: arefiner_forward.1
$region0: #{arefiner_forward.1}
  #allocation0 [shape = 'u32[]', space=smem, size = 0x4, offset = 0x4, fixed_abs, tag = 'smem constant byte address 0x4 - core index']
  #allocation1 [shape = 'u32[72,128]{1,0:T(1,128)}', space=vmem, size = 0x9000, scoped, tag = 'internal scratch']
  %s0 = inlined_call_operand.vmem [shape: f32[2,32,256], index: 0, kind: input, shape index: {}]
  %s1 = inlined_call_operand.vmem [shape: f32[32,128], index: 1, kind: input, shape index: {}]
  %s2 = inlined_call_operand.vmem [shape: f32[1,128], index: 2, kind: input, shape index: {}]
  %s3 = inlined_call_operand.hbm [shape: f32[2,128], index: 3, kind: output, shape index: {}]
  %s4 = sld [smem:[#allocation0]]
  $region22: #{arefiner_forward.1} parent=0
    _
  %s6 = ssub.s32 1, %s4
  %s7 = scalar_select 0, %s6, %s4
  $region1: #{arefiner_forward.1} parent=0
    #allocation2 [shape = 'u8[1024]{0}', space=vmem, size = 0x400, scoped, tag = 'output window, operand 0, single buffered']
    #allocation3 [shape = 's32[1]{0}', space=sflag, size = 0x4, scoped, tag = 'scoped memory for arefiner_forward.1']
    %8 = vsyncpa [#allocation3], 0
    // Predicated region
    $region2: #{arefiner_forward.1} parent=1 // pred_check
      _
    $region3: #{arefiner_forward.1} parent=1 // pred_check_branch
      %10 = sbr.rel (0) target = $region5
    $region4: #{arefiner_forward.1} parent=1 // pred_region
      _
    $region5: #{arefiner_forward.1} parent=1 // pred_fallthru
      _
    // Predicated region
    $region6: #{arefiner_forward.1} parent=1 // pred_check
      _
    $region7: #{arefiner_forward.1} parent=1 // pred_check_branch
      %12 = sbr.rel (0) target = $region9
    $region8: #{arefiner_forward.1} parent=1 // pred_region
      _
    $region9: #{arefiner_forward.1} parent=1 // pred_fallthru
      _
    // Predicated region
    $region10: #{arefiner_forward.1} parent=1 // pred_check
      _
    $region11: #{arefiner_forward.1} parent=1 // pred_check_branch
      %14 = sbr.rel (0) target = $region13
    $region12: #{arefiner_forward.1} parent=1 // pred_region
      _
    $region13: #{arefiner_forward.1} parent=1 // pred_fallthru
      _
    %v15 = vld [vmem:[%s0] sm:$0xff]
    %v16 = vld [vmem:[%s0 + $0x8] sm:$0xff]
    %v17 = vld [vmem:[%s0 + $0x10] sm:$0xff]
    %v18 = vld [vmem:[%s0 + $0x18] sm:$0xff]
    %v19 = vld [vmem:[%s0 + $0x20] sm:$0xff]
    %v20 = vld [vmem:[%s0 + $0x28] sm:$0xff]
    %v21 = vld [vmem:[%s0 + $0x30] sm:$0xff]
    %v22 = vld [vmem:[%s0 + $0x38] sm:$0xff]
    %v23 = vld [vmem:[%s0 + $0x40] sm:$0xff]
    %v24 = vld [vmem:[%s0 + $0x48] sm:$0xff]
    %v25 = vld [vmem:[%s0 + $0x50] sm:$0xff]
    %v26 = vld [vmem:[%s0 + $0x58] sm:$0xff]
    %v27 = vld [vmem:[%s0 + $0x60] sm:$0xff]
    %v28 = vld [vmem:[%s0 + $0x68] sm:$0xff]
    %v29 = vld [vmem:[%s0 + $0x70] sm:$0xff]
    %v30 = vld [vmem:[%s0 + $0x78] sm:$0xff]
    %v31 = vadd.f32 %v15, %v16
    %32 = vadd.xlane.f32.xlu0 %v31
    %v33 = vpop.xlane.xlu0 %32
    %v34 = vadd.f32 %v17, %v18
    %35 = vadd.xlane.f32.xlu0 %v34
    %v36 = vpop.xlane.xlu0 %35
    %v37 = vadd.f32 %v19, %v20
    %38 = vadd.xlane.f32.xlu0 %v37
    %v39 = vpop.xlane.xlu0 %38
    %v40 = vadd.f32 %v21, %v22
    %41 = vadd.xlane.f32.xlu0 %v40
    %v42 = vpop.xlane.xlu0 %41
    %v43 = vadd.f32 %v23, %v24
    %44 = vadd.xlane.f32.xlu0 %v43
    %v45 = vpop.xlane.xlu0 %44
    %v46 = vadd.f32 %v25, %v26
    %47 = vadd.xlane.f32.xlu0 %v46
    %v48 = vpop.xlane.xlu0 %47
    %v49 = vadd.f32 %v27, %v28
    %50 = vadd.xlane.f32.xlu0 %v49
    %v51 = vpop.xlane.xlu0 %50
    %v52 = vadd.f32 %v29, %v30
    %53 = vadd.xlane.f32.xlu0 %v52
    %v54 = vpop.xlane.xlu0 %53
    %v55 = vmul.f32 %v33, 0.00390625
    %v56 = vmul.f32 %v36, 0.00390625
    %v57 = vmul.f32 %v39, 0.00390625
    %v58 = vmul.f32 %v42, 0.00390625
    %v59 = vmul.f32 %v45, 0.00390625
    %v60 = vmul.f32 %v48, 0.00390625
    %v61 = vmul.f32 %v51, 0.00390625
    %v62 = vmul.f32 %v54, 0.00390625
    %v63 = vld [vmem:[%s1] sm:$0xff]
    %v64 = vld [vmem:[%s1 + $0x8] sm:$0xff]
    %v65 = vld [vmem:[%s1 + $0x10] sm:$0xff]
    %v66 = vld [vmem:[%s1 + $0x18] sm:$0xff]
    %v67 = vld [vmem:[%s2] sm:$0x1]
    %v69 = vperm.slane %v67, 0
    %v79 = vlaneseq
    %v80 = vand.u32 %v79, 127
    %v81 = vperm.slane %v55, %v80
    %v82 = vadd.s32 %v80, 4294967288
    %v83 = vperm.slane %v56, %v82
    %vm84 = vcmask 130112
    %v85 = vsel %vm84, %v83, %v81
    %v86 = vadd.s32 %v80, 4294967280
    %v87 = vperm.slane %v57, %v86
    %vm88 = vcmask 195712
    %v89 = vsel %vm88, %v87, %v85
    %v90 = vadd.s32 %v80, 4294967272
    %v91 = vperm.slane %v58, %v90
    %vm92 = vcmask 261312
    %v93 = vsel %vm92, %v91, %v89
    %v94 = vperm.slane %v59, %v80
    %v95 = vperm.slane %v60, %v82
    %v96 = vsel %vm84, %v95, %v94
    %v97 = vperm.slane %v61, %v86
    %v98 = vsel %vm88, %v97, %v96
    %v99 = vperm.slane %v62, %v90
    %v100 = vsel %vm92, %v99, %v98
    %vm101 = vcmask 1041409
    %v102 = vsel %vm101, %v100, %v93
    %vm103 = vcmask 261120
    %v104 = vsel %vm103, %v102, 0
    %106 = vmatpush.msra.mxu0 0.0
    %107 = vmatpush.msra.mxu0 0.0
    %108 = vmatpush.msra.mxu0 0.0
    %109 = vmatpush.msra.mxu0 0.0
    %110 = vmatpush.msra.mxu0 0.0
    %111 = vmatpush.msra.mxu0 0.0
    %112 = vmatpush.msra.mxu0 0.0
    %113 = vmatpush.msra.mxu0 0.0
    %114 = vmatpush.msra.mxu0 0.0
    %115 = vmatpush.msra.mxu0 0.0
    %116 = vmatpush.msra.mxu0 0.0
    %117 = vmatpush.msra.mxu0 0.0
    %118 = vmatpush.msra.mxu0 %v66
    %119 = vmatpush.msra.mxu0 %v65
    %120 = vmatpush.msra.mxu0 %v64
    %121 = vmatpush.msra.mxu0 %v63
    %122 = vmatmul.f32.gmra.mxu0 %v104
    %v123 = vpop.f32.mrf.mxu0
    %v124 = vadd.f32 %v69, %v123
    %125 = vdwg.mxu0
    %v126 = vmax.f32 %v124, 0.0
    %127 = vst [vmem:[#allocation2] sm:$0x3] %v126
    // Predicated region
    $region14: #{arefiner_forward.1} parent=1 // pred_check
      _
    $region15: #{arefiner_forward.1} parent=1 // pred_check_branch
      %129 = sbr.rel (0) target = $region17
    $region16: #{arefiner_forward.1} parent=1 // pred_region
      %131 = vsyncadd [#allocation3], 0
      %s133 = sshll.u32 [#allocation2], 4
      %s134 = int_to_ptr.vmem [resolvable:$true] %s133
      %s135 = sshll.u32 %s3, 4
      %s136 = int_to_ptr.hbm [resolvable:$true] %s135
      %138 = dma.vmem_to_hbm [thread:$0]  %s134, 32, %s136, [#allocation3]
    $region17: #{arefiner_forward.1} parent=1 // pred_fallthru
      _
    // Predicated region
    $region18: #{arefiner_forward.1} parent=1 // pred_check
      _
    $region19: #{arefiner_forward.1} parent=1 // pred_check_branch
      %140 = sbr.rel (0) target = $region21
    $region20: #{arefiner_forward.1} parent=1 // pred_region
      %142 = dma.done [#allocation3], 32
    $region21: #{arefiner_forward.1} parent=1 // pred_fallthru
      _
    %143 = vsyncpa [#allocation3], 1

</llo_original>
